<compile_context>
chip_gen: v7x
topology: tpu7x:2x2x1
jax: 0.10.0
libtpu: 0.0.40
codegen_flags: <defaults>
</compile_context>

<pallas_src>
import functools

import jax
import jax.numpy as jnp
import numpy as np
from jax import lax
from jax.experimental import pallas as pl
from jax.experimental.pallas import tpu as pltpu


def _bins(in_size, out_size):
    """PyTorch adaptive pooling bin boundaries (may overlap when not divisible)."""
    return [
        (int(np.floor(i * in_size / out_size)),
         int(np.ceil((i + 1) * in_size / out_size)))
        for i in range(out_size)
    ]


def _pool_matrix_3d(D, H, W, OS, dhw_pad, os3_pad, dtype):
    """(dhw_pad, os3_pad) matrix folding D/H/W pooling + 1/bin_volume scaling.

    Rows >= D*H*W and columns >= OS**3 are explicit zeros (padding), so padded
    regions can never contribute to the accumulation."""
    P = np.zeros((dhw_pad, os3_pad), dtype=np.float32)
    d_bins, h_bins, w_bins = _bins(D, OS), _bins(H, OS), _bins(W, OS)
    for od, (d0, d1) in enumerate(d_bins):
        for oh, (h0, h1) in enumerate(h_bins):
            for ow, (w0, w1) in enumerate(w_bins):
                scale = 1.0 / ((d1 - d0) * (h1 - h0) * (w1 - w0))
                o = (od * OS + oh) * OS + ow
                for d in range(d0, d1):
                    for h in range(h0, h1):
                        base = (d * H + h) * W
                        P[base + w0:base + w1, o] = scale
    return P.astype(dtype)


def _masked_pool_kernel(x_ref, m_ref, p_ref, o_ref, acc_ref, *, dhw, tk):
    # x_ref: (1, TC, TK)   m_ref: (1, TCm, TK)   p_ref: (TK, OS3_pad)
    # o_ref: (1, TC, OS3_pad)   acc_ref: (TC, OS3_pad) f32 scratch
    k = pl.program_id(2)

    @pl.when(k == 0)
    def _():
        acc_ref[...] = jnp.zeros_like(acc_ref)

    xm = x_ref[0] * m_ref[0]  # mask row broadcasts over the channel tile if TCm == 1
    if dhw % tk != 0:
        # Zero the tail of the (single) partial DHW block so block-padding
        # garbage in the x / mask tiles cannot leak into the accumulation.
        col = k * tk + lax.broadcasted_iota(jnp.int32, xm.shape, xm.ndim - 1)
        xm = jnp.where(col < dhw, xm, jnp.zeros_like(xm))

    acc_ref[...] += jnp.dot(xm, p_ref[...], preferred_element_type=jnp.float32)

    @pl.when(k == pl.num_programs(2) - 1)
    def _():
        o_ref[0] = acc_ref[...].astype(o_ref.dtype)


# Conservative per-step VMEM data budget: fits default scoped limits and the
# physical VMEM of all three generations (v5e/v6e 128 MiB, v7x 64 MiB) with
# headroom for double-buffering and compiler scratch.
_DATA_BUDGET_BYTES = 20 * 1024 * 1024
_VMEM_LIMIT_BYTES = 48 * 1024 * 1024  # < v7x's 64 MiB physical VMEM


def _footprint(tc, tcm, tk, os3_pad, xbytes):
    # 2x double-buffered x / mask / P / out blocks + f32 accumulator + xm temp.
    return (2 * xbytes * (tc * tk + tcm * tk + tk * os3_pad + tc * os3_pad)
            + 4 * tc * os3_pad + xbytes * tc * tk)


def _choose_tiles(C, DHW, os3_pad, xbytes, mask_per_channel):
    """Pick (TC, TK): channel tile and DHW-contraction tile within the budget."""
    def fits(tc, tk):
        tcm = tc if mask_per_channel else 1
        return _footprint(tc, tcm, tk, os3_pad, xbytes) <= _DATA_BUDGET_BYTES

    def largest_tc(tk):
        if fits(C, tk):
            return C
        tc = (min(C, 1024) // 8) * 8
        while tc >= 8 and not fits(tc, tk):
            tc -= 8
        return tc if tc >= 8 else 0

    # Prefer contracting the whole DHW in one grid step (single k iteration).
    tc = largest_tc(DHW)
    if tc:
        return tc, DHW
    # Otherwise tile DHW in lane-aligned chunks (multiples of 128).
    tk = max(128, (DHW // 128) * 128)
    while tk > 128 and not largest_tc(tk):
        tk = max(128, ((tk // 2) // 128) * 128)
    tc = largest_tc(tk)
    if not tc:  # pathological fallback: smallest legal tiles
        tc, tk = (C if C < 8 else 8), 128
    return tc, tk


def masked_adaptive_avg_pool3d(x, mask, output_size):
    """x: (B, C, D, H, W); mask broadcastable to x. Returns (B, C, OS, OS, OS)."""
    B, C, D, H, W = x.shape
    OS = int(output_size)
    OS3 = OS * OS * OS
    OS3_pad = ((OS3 + 127) // 128) * 128  # lane-dense output block
    DHW = D * H * W
    xbytes = jnp.dtype(x.dtype).itemsize

    # --- mask normalisation: keep size-1 batch/channel dims un-materialised in
    #     HBM (index_map returns 0); only spatial dims must match (D, H, W). ---
    mask = jnp.asarray(mask, x.dtype)
    if mask.ndim < 5:
        mask = mask.reshape((1,) * (5 - mask.ndim) + mask.shape)
    if mask.shape[2:] != (D, H, W):
        mask = jnp.broadcast_to(mask, mask.shape[:2] + (D, H, W))
    Bm, Cm = mask.shape[:2]
    if Bm not in (1, B) or Cm not in (1, C):
        raise ValueError(f"mask shape {mask.shape} not broadcastable to {x.shape}")

    xf = x.reshape(B, C, DHW)
    mf = mask.reshape(Bm, Cm, DHW)

    TC, TK = _choose_tiles(C, DHW, OS3_pad, xbytes, mask_per_channel=(Cm == C))
    # v7x has 2 TensorCores: make sure the parallel grid has >= 2 steps.
    if B * pl.cdiv(C, TC) < 2 and C >= 16:
        TC = max(8, ((C // 2) // 8) * 8)
    n_c = pl.cdiv(C, TC)
    n_k = pl.cdiv(DHW, TK)
    TCm = TC if Cm == C else 1

    # bf16 x -> bf16 P (native MXU path, f32 accumulate); otherwise f32.
    p_dtype = jnp.bfloat16 if x.dtype == jnp.bfloat16 else jnp.float32
    pool_mat = jnp.asarray(
        _pool_matrix_3d(D, H, W, OS, dhw_pad=n_k * TK, os3_pad=OS3_pad,
                        dtype=p_dtype))

    b_of = (lambda b: b) if Bm == B else (lambda b: 0)
    c_of = (lambda c: c) if Cm == C else (lambda c: 0)

    x_spec = pl.BlockSpec((1, TC, TK), lambda b, c, k: (b, c, k))
    m_spec = pl.BlockSpec((1, TCm, TK), lambda b, c, k: (b_of(b), c_of(c), k))
    p_spec = pl.BlockSpec((TK, OS3_pad), lambda b, c, k: (k, 0))
    o_spec = pl.BlockSpec((1, TC, OS3_pad), lambda b, c, k: (b, c, 0))

    kernel = functools.partial(_masked_pool_kernel, dhw=DHW, tk=TK)

    cost = pl.CostEstimate(
        flops=2 * B * C * DHW * OS3 + B * C * DHW,
        transcendentals=0,
        bytes_accessed=(xf.size + mf.size + B * C * OS3_pad) * xbytes,
    )

    out = pl.pallas_call(
        kernel,
        out_shape=jax.ShapeDtypeStruct((B, C, OS3_pad), x.dtype),
        grid=(B, n_c, n_k),
        in_specs=[x_spec, m_spec, p_spec],
        out_specs=o_spec,
        scratch_shapes=[pltpu.VMEM((TC, OS3_pad), jnp.float32)],
        compiler_params=pltpu.CompilerParams(
            dimension_semantics=("parallel", "parallel", "arbitrary"),
            vmem_limit_bytes=_VMEM_LIMIT_BYTES,
        ),
        cost_estimate=cost,
    )(xf, mf, pool_mat)

    return out[..., :OS3].reshape(B, C, OS, OS, OS)


def _reference(x, mask, output_size):
    """Pure numpy reference matching F.adaptive_avg_pool3d(x * mask, OS)."""
    x = np.asarray(x, np.float64)
    m = np.broadcast_to(np.asarray(mask, np.float64), x.shape)
    xm = x * m
    B, C, D, H, W = x.shape
    OS = output_size
    out = np.zeros((B, C, OS, OS, OS), dtype=np.float64)
    for p, (d0, d1) in enumerate(_bins(D, OS)):
        for q, (h0, h1) in enumerate(_bins(H, OS)):
            for r, (w0, w1) in enumerate(_bins(W, OS)):
                out[:, :, p, q, r] = xm[:, :, d0:d1, h0:h1, w0:w1].mean(axis=(2, 3, 4))
    return out


if __name__ == "__main__":
    B, C, D, H, W = 2, 4, 7, 10, 12
    OUTPUT_SIZE = 3

    key = jax.random.PRNGKey(0)
    kx, km = jax.random.split(key)
    x = jax.random.normal(kx, (B, C, D, H, W), dtype=jnp.float32)
    # mask broadcast over channels, as typically used with this module
    mask = (jax.random.uniform(km, (B, 1, D, H, W)) > 0.5).astype(jnp.float32)

    y = masked_adaptive_avg_pool3d(x, mask, OUTPUT_SIZE)
    y = jax.block_until_ready(y)

    y_ref = _reference(np.asarray(x), np.asarray(mask), OUTPUT_SIZE)
    np.testing.assert_allclose(np.asarray(y), y_ref, rtol=1e-5, atol=1e-5)

    print("KERNEL_OK")
</pallas_src>

<mosaic_0001>
module attributes {stable_mosaic.version = 11 : i64} {
  func.func @_masked_pool_kernel(%arg0: i32, %arg1: i32, %arg2: i32, %arg3: memref<1x4x840xf32, #tpu.memory_space<vmem>>, %arg4: memref<1x1x840xf32, #tpu.memory_space<vmem>>, %arg5: memref<840x128xf32, #tpu.memory_space<vmem>>, %arg6: memref<1x4x128xf32, #tpu.memory_space<vmem>>, %arg7: memref<4x128xf32, #tpu.memory_space<vmem>>) attributes {dimension_semantics = [#tpu.dimension_semantics<parallel>, #tpu.dimension_semantics<parallel>, #tpu.dimension_semantics<arbitrary>], iteration_bounds = array<i64: 2, 1, 1>, scalar_prefetch = 0 : i64, scratch_operands = 1 : i64, tpu.core_type = #tpu.core_type<tc>, window_params = [{transform_indices = @transform_0, window_bounds = array<i64: 1, 4, 840>}, {transform_indices = @transform_1, window_bounds = array<i64: 1, 1, 840>}, {transform_indices = @transform_2, window_bounds = array<i64: 840, 128>}, {transform_indices = @transform_3, window_bounds = array<i64: 1, 4, 128>}]} {
    %c0_i32 = arith.constant 0 : i32
    %0 = arith.cmpi eq, %arg2, %c0_i32 : i32
    %1 = arith.extui %0 : i1 to i32
    %c0_i32_0 = arith.constant 0 : i32
    %2 = arith.cmpi ne, %1, %c0_i32_0 : i32
    scf.if %2 {
      %cst_14 = arith.constant 0.000000e+00 : f32
      %17 = vector.broadcast %cst_14 : f32 to vector<4x128xf32>
      %c0_15 = arith.constant 0 : index
      %c0_16 = arith.constant 0 : index
      %18 = vector.load %arg7[%c0_15, %c0_16] : memref<4x128xf32, #tpu.memory_space<vmem>>, vector<4x128xf32>
      tpu.vector_store %arg7[%c0_15, %c0_16], %17 {strides = array<i32>} : memref<4x128xf32, #tpu.memory_space<vmem>>, vector<4x128xf32>,
    } else {
    }
    %c0 = arith.constant 0 : index
    %c0_1 = arith.constant 0 : index
    %c0_2 = arith.constant 0 : index
    %3 = vector.load %arg3[%c0, %c0_1, %c0_2] : memref<1x4x840xf32, #tpu.memory_space<vmem>>, vector<1x4x840xf32>
    %4 = vector.shape_cast %3 : vector<1x4x840xf32> to vector<4x840xf32>
    %c0_3 = arith.constant 0 : index
    %c0_4 = arith.constant 0 : index
    %c0_5 = arith.constant 0 : index
    %5 = vector.load %arg4[%c0_3, %c0_4, %c0_5] : memref<1x1x840xf32, #tpu.memory_space<vmem>>, vector<1x1x840xf32>
    %6 = vector.shape_cast %5 : vector<1x1x840xf32> to vector<1x840xf32>
    %7 = vector.broadcast %6 : vector<1x840xf32> to vector<4x840xf32>
    %8 = arith.mulf %4, %7 : vector<4x840xf32>
    %c0_6 = arith.constant 0 : index
    %c0_7 = arith.constant 0 : index
    %9 = vector.load %arg7[%c0_6, %c0_7] : memref<4x128xf32, #tpu.memory_space<vmem>>, vector<4x128xf32>
    %c0_8 = arith.constant 0 : index
    %c0_9 = arith.constant 0 : index
    %10 = vector.load %arg5[%c0_8, %c0_9] : memref<840x128xf32, #tpu.memory_space<vmem>>, vector<840x128xf32>
    %cst = arith.constant dense<0.000000e+00> : vector<4x128xf32>
    %11 = tpu.matmul %8, %10, %cst {dimension_numbers = #tpu.dot_dimension_numbers<[1], [0], [0], [1], [0, 0, 1, 1], [], []>} : vector<4x840xf32>, vector<840x128xf32>, vector<4x128xf32> -> vector<4x128xf32>
    %12 = arith.addf %9, %11 : vector<4x128xf32>
    %c0_10 = arith.constant 0 : index
    %c0_11 = arith.constant 0 : index
    %13 = vector.load %arg7[%c0_10, %c0_11] : memref<4x128xf32, #tpu.memory_space<vmem>>, vector<4x128xf32>
    tpu.vector_store %arg7[%c0_10, %c0_11], %12 {strides = array<i32>} : memref<4x128xf32, #tpu.memory_space<vmem>>, vector<4x128xf32>,
    %c0_i32_12 = arith.constant 0 : i32
    %14 = arith.cmpi eq, %arg2, %c0_i32_12 : i32
    %15 = arith.extui %14 : i1 to i32
    %c0_i32_13 = arith.constant 0 : i32
    %16 = arith.cmpi ne, %15, %c0_i32_13 : i32
    scf.if %16 {
      %c0_14 = arith.constant 0 : index
      %c0_15 = arith.constant 0 : index
      %17 = vector.load %arg7[%c0_14, %c0_15] : memref<4x128xf32, #tpu.memory_space<vmem>>, vector<4x128xf32>
      %c0_16 = arith.constant 0 : index
      %c0_17 = arith.constant 0 : index
      %c0_18 = arith.constant 0 : index
      %18 = vector.load %arg6[%c0_16, %c0_17, %c0_18] : memref<1x4x128xf32, #tpu.memory_space<vmem>>, vector<1x4x128xf32>
      %19 = vector.shape_cast %18 : vector<1x4x128xf32> to vector<4x128xf32>
      %20 = vector.shape_cast %17 : vector<4x128xf32> to vector<1x4x128xf32>
      tpu.vector_store %arg6[%c0_16, %c0_17, %c0_18], %20 {strides = array<i32>} : memref<1x4x128xf32, #tpu.memory_space<vmem>>, vector<1x4x128xf32>,
    } else {
    }
    return
  }
  func.func @transform_0(%arg0: i32, %arg1: i32, %arg2: i32) -> (i32, i32, i32) {
    %c0_i32 = arith.constant 0 : i32
    return %arg0, %arg1, %arg2 : i32, i32, i32
  }
  func.func @transform_1(%arg0: i32, %arg1: i32, %arg2: i32) -> (i32, i32, i32) {
    %c0_i32 = arith.constant 0 : i32
    %c0_i32_0 = arith.constant 0 : i32
    return %arg0, %c0_i32, %arg2 : i32, i32, i32
  }
  func.func @transform_2(%arg0: i32, %arg1: i32, %arg2: i32) -> (i32, i32) {
    %c0_i32 = arith.constant 0 : i32
    %c0_i32_0 = arith.constant 0 : i32
    return %arg2, %c0_i32 : i32, i32
  }
  func.func @transform_3(%arg0: i32, %arg1: i32, %arg2: i32) -> (i32, i32, i32) {
    %c0_i32 = arith.constant 0 : i32
    %c0_i32_0 = arith.constant 0 : i32
    return %arg0, %arg1, %c0_i32 : i32, i32, i32
  }
}

</mosaic_0001>

<llo_original>
// kernel: tpu_custom_call.1
$region0: #{tpu_custom_call.1}
  #allocation0 [shape = 'u32[]', space=smem, size = 0x4, offset = 0x4, fixed_abs, tag = 'smem constant byte address 0x4 - core index']
  #allocation1 [shape = 'u32[144,128]{1,0:T(1,128)}', space=vmem, size = 0x12000, scoped, tag = 'internal scratch']
  #allocation2 [shape = 'f32[4,128]{1,0:T(4,128)}', space=vmem, size = 0x800, scoped, tag = 'scratch operand']
  %s0 = inlined_call_operand.hbm [shape: f32[2,4,840], index: 0, kind: input, shape index: {}]
  %s1 = inlined_call_operand.hbm [shape: f32[2,1,840], index: 1, kind: input, shape index: {}]
  %s2 = inlined_call_operand.hbm [shape: f32[840,128], index: 2, kind: input, shape index: {}]
  %s3 = inlined_call_operand.hbm [shape: f32[2,4,128], index: 3, kind: output, shape index: {}]
  %s4 = sld [smem:[#allocation0]]
  $region65: #{tpu_custom_call.1} parent=0
    _
  %s6 = ssub.s32 1, %s4
  %s7 = scalar_select 0, %s6, %s4
  $region1: #{tpu_custom_call.1} parent=0
    #allocation3 [shape = 'u8[28672]{0}', space=vmem, size = 0x7000, scoped, tag = 'input window, operand 0']
    #allocation4 [shape = 's32[2]{0}', space=sflag, size = 0x8, scoped, tag = 'scoped memory for tpu_custom_call.1']
    #allocation5 [shape = 's32[2]{0}', space=sflag, size = 0x8, scoped, tag = 'scoped memory for tpu_custom_call.1']
    #allocation6 [shape = 'u8[7168]{0}', space=vmem, size = 0x1c00, scoped, tag = 'input window, operand 1']
    #allocation7 [shape = 's32[2]{0}', space=sflag, size = 0x8, scoped, tag = 'scoped memory for tpu_custom_call.1']
    #allocation8 [shape = 'u8[430080]{0}', space=vmem, size = 0x69000, scoped, tag = 'input window, operand 2, single buffered']
    #allocation9 [shape = 'u8[4096]{0}', space=vmem, size = 0x1000, scoped, tag = 'output window, operand 0']
    %8 = vsyncpa [#allocation4], 0
    %s9 = scalar_lea.sflag [#allocation4], 1
    %10 = vsyncpa %s9, 0
    %11 = vsyncpa [#allocation7], 0
    %s12 = scalar_lea.sflag [#allocation7], 1
    %13 = vsyncpa %s12, 0
    %14 = vsyncpa [#allocation5], 0
    %s15 = scalar_lea.sflag [#allocation5], 1
    %16 = vsyncpa %s15, 0
    loop: start=0, step=1, limit=4
    $region2: #{tpu_custom_call.1} parent=1 // loop_pre_header
      _
    $region3: #{tpu_custom_call.1} parent=1 // loop_header
      %s18 = sphi 0, %s22
      %p19 = scmp.ge.s32.totalorder %s18, 4
      %s25 = sphi 0, %s44
      %s26 = sphi 0, %s40
      %s27 = sphi 0, %s36
      %s28 = sphi 0, %s25
      %s29 = sphi 0, %s26
      %s30 = sphi 0, %s27
      %s31 = sphi 0, %s28
      %s32 = sphi 0, %s29
      %s33 = sphi 0, %s30
      %s51 = sphi 0, %s53
      %s54 = sphi 0, %s51
      %s55 = sphi 0, %s54
      %s71 = sphi 0, %s55
      %s79 = sphi 0, %s81
      %s82 = sphi 0, %s79
      %s83 = sphi 0, %s82
      %s99 = sphi 0, %s83
      %s105 = sphi 0, %s107
      %s108 = sphi 0, %s105
      %s109 = sphi 0, %s108
      %s125 = sphi 0, %s109
      %s133 = sphi 0, %s135
      %s136 = sphi 0, %s133
      %s137 = sphi 0, %s136
      %s153 = sphi 0, %s137
    $region4: #{tpu_custom_call.1} parent=1 // loop_header_branch
      %21 = sbr.rel (%p19) target = $region8
    $region5: #{tpu_custom_call.1} parent=1 // loop_body
      %s23 = ssub.s32 %s18, 1
      %s24 = ssub.s32 %s18, 2
      %s34 = sadd.s32 1, %s27
      %p35 = scmp.ge.s32.totalorder %s34, 1
      %s36 = scalar_select %p35, 0, %s34
      %s37 = sadd.s32 1, %s26
      %s38 = scalar_select %p35, %s37, %s26
      %p39 = scmp.ge.s32.totalorder %s38, 1
      %s40 = scalar_select %p39, 0, %s38
      %s41 = sadd.s32 1, %s25
      %s42 = scalar_select %p39, %s41, %s25
      %p43 = scmp.ge.s32.totalorder %s42, 2
      %s44 = scalar_select %p43, 0, %s42
      %s45 = ssub.s32 %s25, %s44
      %s46 = ssub.s32 %s26, %s40
      %s47 = sor.u32 %s45, %s46
      %s48 = ssub.s32 %s27, %s36
      %s49 = sor.u32 %s47, %s48
      %p50 = scmp.eq.s32.totalorder %s49, 0
      %s52 = sadd.s32 %s51, 1
      %s53 = scalar_select %p50, %s51, %s52
      %p56 = pneg %p50
      %p57 = scmp.eq.s32.totalorder %s18, 1
      %p58 = por %p56, %p57
      %p59 = scmp.ne.s32.totalorder %s51, %s54
      %p60 = scmp.eq.s32.totalorder %s18, 0
      %p61 = por %p59, %p60
      %p62 = scmp.ne.s32.totalorder %s51, %s54
      %p63 = scmp.eq.s32.totalorder %s23, 1
      %p64 = por %p62, %p63
      %p65 = scmp.ne.s32.totalorder %s54, %s55
      %p66 = scmp.eq.s32.totalorder %s23, 0
      %p67 = por %p65, %p66
      %p68 = scmp.ne.s32.totalorder %s54, %s55
      %p69 = scmp.eq.s32.totalorder %s24, 1
      %p70 = por %p68, %p69
      %p72 = scmp.ne.s32.totalorder %s55, %s71
      %p73 = scmp.eq.s32.totalorder %s24, 0
      %p74 = por %p72, %p73
      %s75 = ssub.s32 %s25, %s44
      %s76 = ssub.s32 %s27, %s36
      %s77 = sor.u32 %s75, %s76
      %p78 = scmp.eq.s32.totalorder %s77, 0
      %s80 = sadd.s32 %s79, 1
      %s81 = scalar_select %p78, %s79, %s80
      %p84 = pneg %p78
      %p85 = scmp.eq.s32.totalorder %s18, 1
      %p86 = por %p84, %p85
      %p87 = scmp.ne.s32.totalorder %s79, %s82
      %p88 = scmp.eq.s32.totalorder %s18, 0
      %p89 = por %p87, %p88
      %p90 = scmp.ne.s32.totalorder %s79, %s82
      %p91 = scmp.eq.s32.totalorder %s23, 1
      %p92 = por %p90, %p91
      %p93 = scmp.ne.s32.totalorder %s82, %s83
      %p94 = scmp.eq.s32.totalorder %s23, 0
      %p95 = por %p93, %p94
      %p96 = scmp.ne.s32.totalorder %s82, %s83
      %p97 = scmp.eq.s32.totalorder %s24, 1
      %p98 = por %p96, %p97
      %p100 = scmp.ne.s32.totalorder %s83, %s99
      %p101 = scmp.eq.s32.totalorder %s24, 0
      %p102 = por %p100, %p101
      %s103 = ssub.s32 %s27, %s36
      %p104 = scmp.eq.s32.totalorder %s103, 0
      %s106 = sadd.s32 %s105, 1
      %s107 = scalar_select %p104, %s105, %s106
      %p110 = pneg %p104
      %p111 = scmp.eq.s32.totalorder %s18, 1
      %p112 = por %p110, %p111
      %p113 = scmp.ne.s32.totalorder %s105, %s108
      %p114 = scmp.eq.s32.totalorder %s18, 0
      %p115 = por %p113, %p114
      %p116 = scmp.ne.s32.totalorder %s105, %s108
      %p117 = scmp.eq.s32.totalorder %s23, 1
      %p118 = por %p116, %p117
      %p119 = scmp.ne.s32.totalorder %s108, %s109
      %p120 = scmp.eq.s32.totalorder %s23, 0
      %p121 = por %p119, %p120
      %p122 = scmp.ne.s32.totalorder %s108, %s109
      %p123 = scmp.eq.s32.totalorder %s24, 1
      %p124 = por %p122, %p123
      %p126 = scmp.ne.s32.totalorder %s109, %s125
      %p127 = scmp.eq.s32.totalorder %s24, 0
      %p128 = por %p126, %p127
      %s129 = ssub.s32 %s25, %s44
      %s130 = ssub.s32 %s26, %s40
      %s131 = sor.u32 %s129, %s130
      %p132 = scmp.eq.s32.totalorder %s131, 0
      %s134 = sadd.s32 %s133, 1
      %s135 = scalar_select %p132, %s133, %s134
      %p138 = pneg %p132
      %p139 = scmp.eq.s32.totalorder %s18, 1
      %p140 = por %p138, %p139
      %p141 = scmp.ne.s32.totalorder %s133, %s136
      %p142 = scmp.eq.s32.totalorder %s18, 0
      %p143 = por %p141, %p142
      %p144 = scmp.ne.s32.totalorder %s133, %s136
      %p145 = scmp.eq.s32.totalorder %s23, 1
      %p146 = por %p144, %p145
      %p147 = scmp.ne.s32.totalorder %s136, %s137
      %p148 = scmp.eq.s32.totalorder %s23, 0
      %p149 = por %p147, %p148
      %p150 = scmp.ne.s32.totalorder %s136, %s137
      %p151 = scmp.eq.s32.totalorder %s24, 1
      %p152 = por %p150, %p151
      %p154 = scmp.ne.s32.totalorder %s137, %s153
      %p155 = scmp.eq.s32.totalorder %s24, 0
      %p156 = por %p154, %p155
      %p157 = scmp.le.s32.totalorder 1, %s18
      %p158 = scmp.lt.s32.totalorder %s18, 3
      %p159 = pnand %p157, %p158
      %p160 = pneg %p159
      // Predicated region
      $region9: #{tpu_custom_call.1} parent=5 // pred_check
        _
      $region10: #{tpu_custom_call.1} parent=5 // pred_check_branch
        %162 = sbr.rel (%p159) target = $region12
      $region11: #{tpu_custom_call.1} parent=5 // pred_region
        %s163 = ssub.s32 %s18, 1
        // Predicated region
        $region13: #{tpu_custom_call.1} parent=11 // pred_check
          %p164 = pneg %p121
        $region14: #{tpu_custom_call.1} parent=11 // pred_check_branch
          %166 = sbr.rel (%p164) target = $region16
        $region15: #{tpu_custom_call.1} parent=11 // pred_region
          %s167 = smul.u32 105, %s30
          %s169 = ssub.s32 13440, 13440
          %170 = vsyncadd [#allocation7], %s169
          %s171 = smul.addr %s167, 128
          %s172 = scalar_lea.hbm %s2, %s171
          %s173 = sshll.u32 [#allocation8], 4
          %s174 = int_to_ptr.vmem [resolvable:$true] %s173
          %179 = dma.hbm_to_vmem [thread:$0]  %s172, 13440, %s174, [#allocation7], 128, 128, 8
        $region16: #{tpu_custom_call.1} parent=11 // pred_fallthru
          _
      $region12: #{tpu_custom_call.1} parent=5 // pred_fallthru
        _
      %p180 = scmp.lt.s32.totalorder %s18, 2
      // Predicated region
      $region17: #{tpu_custom_call.1} parent=5 // pred_check
        %p181 = pneg %p180
      $region18: #{tpu_custom_call.1} parent=5 // pred_check_branch
        %183 = sbr.rel (%p181) target = $region20
      $region19: #{tpu_custom_call.1} parent=5 // pred_region
        // Predicated region
        $region21: #{tpu_custom_call.1} parent=19 // pred_check
          %p184 = pneg %p61
        $region22: #{tpu_custom_call.1} parent=19 // pred_check_branch
          %186 = sbr.rel (%p184) target = $region24
        $region23: #{tpu_custom_call.1} parent=19 // pred_region
          %s187 = sand.u32 %s51, 1
          %s188 = scalar_lea.sflag [#allocation4], %s187
          %s189 = sand.u32 %s51, 1
          %s190 = smul.addr %s189, 28
          %s191 = scalar_lea.vmem [#allocation3], %s190
          %s192 = smul.u32 7, %s27
          %s194 = ssub.s32 448, 448
          %195 = vsyncadd %s188, %s194
          %s196 = smul.addr %s26, 7
          %s197 = sadd.s32 %s192, %s196
          %s198 = smul.addr %s25, 7
          %s199 = sadd.s32 %s197, %s198
          %s200 = smul.addr %s199, 64
          %s201 = scalar_lea.hbm %s0, %s200
          %s203 = sshll.u32 %s191, 4
          %s204 = int_to_ptr.vmem [resolvable:$true] %s203
          %206 = dma.hbm_to_vmem [thread:$0]  %s201, 448, %s204, %s188
        $region24: #{tpu_custom_call.1} parent=19 // pred_fallthru
          _
        // Predicated region
        $region25: #{tpu_custom_call.1} parent=19 // pred_check
          %p207 = pneg %p89
        $region26: #{tpu_custom_call.1} parent=19 // pred_check_branch
          %209 = sbr.rel (%p207) target = $region28
        $region27: #{tpu_custom_call.1} parent=19 // pred_region
          %s210 = sand.u32 %s18, 1
          %s211 = scalar_lea.sflag [#allocation7], %s210
          %s212 = sand.u32 %s79, 1
          %s213 = smul.addr %s212, 7
          %s214 = scalar_lea.vmem [#allocation6], %s213
          %s215 = smul.u32 7, %s27
          %s217 = ssub.s32 112, 112
          %218 = vsyncadd %s211, %s217
          %s219 = smul.addr %s25, 7
          %s220 = sadd.s32 %s215, %s219
          %s221 = smul.addr %s220, 16
          %s222 = scalar_lea.hbm %s1, %s221
          %s224 = sshll.u32 %s214, 4
          %s225 = int_to_ptr.vmem [resolvable:$true] %s224
          %227 = dma.hbm_to_vmem [thread:$0]  %s222, 112, %s225, %s211
        $region28: #{tpu_custom_call.1} parent=19 // pred_fallthru
          _
      $region20: #{tpu_custom_call.1} parent=5 // pred_fallthru
        _
      %p228 = scmp.le.s32.totalorder 1, %s18
      %p229 = scmp.lt.s32.totalorder %s18, 3
      %p230 = pnand %p228, %p229
      %p231 = pneg %p230
      // Predicated region
      $region29: #{tpu_custom_call.1} parent=5 // pred_check
        _
      $region30: #{tpu_custom_call.1} parent=5 // pred_check_branch
        %233 = sbr.rel (%p230) target = $region32
      $region31: #{tpu_custom_call.1} parent=5 // pred_region
        %s234 = ssub.s32 %s18, 1
        %s235 = sand.u32 %s54, 1
        %s236 = scalar_lea.sflag [#allocation4], %s235
        %s237 = sand.u32 %s54, 1
        %s238 = smul.addr %s237, 28
        %s239 = scalar_lea.vmem [#allocation3], %s238
        // Predicated region
        $region33: #{tpu_custom_call.1} parent=31 // pred_check
          %p240 = pneg %p67
        $region34: #{tpu_custom_call.1} parent=31 // pred_check_branch
          %242 = sbr.rel (%p240) target = $region36
        $region35: #{tpu_custom_call.1} parent=31 // pred_region
          %243 = dma.done %s236, 448
        $region36: #{tpu_custom_call.1} parent=31 // pred_fallthru
          _
        %s244 = sand.u32 %s23, 1
        %s245 = scalar_lea.sflag [#allocation7], %s244
        %s246 = sand.u32 %s82, 1
        %s247 = smul.addr %s246, 7
        %s248 = scalar_lea.vmem [#allocation6], %s247
        // Predicated region
        $region37: #{tpu_custom_call.1} parent=31 // pred_check
          %p249 = pneg %p95
        $region38: #{tpu_custom_call.1} parent=31 // pred_check_branch
          %251 = sbr.rel (%p249) target = $region40
        $region39: #{tpu_custom_call.1} parent=31 // pred_region
          %252 = dma.done %s245, 112
        $region40: #{tpu_custom_call.1} parent=31 // pred_fallthru
          _
        // Predicated region
        $region41: #{tpu_custom_call.1} parent=31 // pred_check
          %p253 = pneg %p121
        $region42: #{tpu_custom_call.1} parent=31 // pred_check_branch
          %255 = sbr.rel (%p253) target = $region44
        $region43: #{tpu_custom_call.1} parent=31 // pred_region
          %256 = dma.done [#allocation7], 13440
        $region44: #{tpu_custom_call.1} parent=31 // pred_fallthru
          _
        %s257 = sand.u32 %s54, 1
        %s258 = scalar_lea.sflag [#allocation4], %s257
        %s259 = sand.u32 %s54, 1
        %s260 = smul.addr %s259, 28
        %s261 = scalar_lea.vmem [#allocation3], %s260
        %p262 = pneg %p67
        %p263 = pneg %p64
        %s264 = sand.u32 %s23, 1
        %s265 = scalar_lea.sflag [#allocation7], %s264
        %s266 = sand.u32 %s82, 1
        %s267 = smul.addr %s266, 7
        %s268 = scalar_lea.vmem [#allocation6], %s267
        %p269 = pneg %p95
        %p270 = pneg %p92
        %p271 = pneg %p121
        %p272 = pneg %p118
        %p273 = pneg %p149
        %p274 = pneg %p146
        %s275 = sand.u32 %s136, 1
        %s276 = scalar_lea.sflag [#allocation5], %s275
        %s277 = sand.u32 %s136, 1
        %s278 = smul.addr %s277, 4
        %s279 = scalar_lea.vmem [#allocation9], %s278
        %s280 = smul.u32 7, %s30
        %s281 = smul.u32 7, %s30
        %s282 = smul.u32 105, %s30
        %p283 = scmp.eq.s32.totalorder %s30, 0
        // Predicated region
        $region45: #{tpu_custom_call.1} parent=31 // pred_check
          %p284 = pneg %p283
        $region46: #{tpu_custom_call.1} parent=31 // pred_check_branch
          %286 = sbr.rel (%p284) target = $region48
        $region47: #{tpu_custom_call.1} parent=31 // pred_region
          %287 = vst [vmem:[#allocation2] sm:$0xf] 0.0
        $region48: #{tpu_custom_call.1} parent=31 // pred_fallthru
          _
        %v288 = vld [vmem:[%s239] sm:$0xff]
        %v289 = vld [vmem:[%s239 + $0x8] sm:$0xff]
        %v290 = vld [vmem:[%s239 + $0x10] sm:$0xff]
        %v291 = vld [vmem:[%s239 + $0x18] sm:$0xf]
        %v292 = vld [vmem:[%s248] sm:$0x7f]
        %v294 = vlaneseq
        %v295 = vshrl.u32 %v294, 7
        %v296 = vsub.s32 0, %v295
        %v297 = vrot.slane %v292, %v296
        %v298 = vlaneseq
        %v299 = vshrl.u32 %v298, 7
        %v300 = vsub.s32 1, %v299
        %v301 = vrot.slane %v292, %v300
        %v302 = vlaneseq
        %v303 = vshrl.u32 %v302, 7
        %v304 = vsub.s32 2, %v303
        %v305 = vrot.slane %v292, %v304
        %v306 = vlaneseq
        %v307 = vshrl.u32 %v306, 7
        %v308 = vsub.s32 3, %v307
        %v309 = vrot.slane %v292, %v308
        %v310 = vlaneseq
        %v311 = vshrl.u32 %v310, 7
        %v312 = vsub.s32 4, %v311
        %v313 = vrot.slane %v292, %v312
        %v314 = vlaneseq
        %v315 = vshrl.u32 %v314, 7
        %v316 = vsub.s32 5, %v315
        %v317 = vrot.slane %v292, %v316
        %v318 = vlaneseq
        %v319 = vshrl.u32 %v318, 7
        %v320 = vsub.s32 6, %v319
        %v321 = vrot.slane %v292, %v320
        %v323 = vcombine.low %v297, %v301
        %v324 = vcombine.low %v305, %v309
        %v325 = vcombine.low %v313, %v317
        %v329 = vmul.f32 %v288, %v323
        %v330 = vmul.f32 %v289, %v324
        %v331 = vmul.f32 %v290, %v325
        %v332 = vmul.f32 %v291, %v321
        %v333 = vld [vmem:[#allocation2] sm:$0xf]
        %v334 = vld [vmem:[#allocation8] sm:$0xff]
        %v335 = vld [vmem:[#allocation8 + $0x8] sm:$0xff]
        %v336 = vld [vmem:[#allocation8 + $0x10] sm:$0xff]
        %v337 = vld [vmem:[#allocation8 + $0x18] sm:$0xff]
        %v338 = vld [vmem:[#allocation8 + $0x20] sm:$0xff]
        %v339 = vld [vmem:[#allocation8 + $0x28] sm:$0xff]
        %v340 = vld [vmem:[#allocation8 + $0x30] sm:$0xff]
        %v341 = vld [vmem:[#allocation8 + $0x38] sm:$0xff]
        %v342 = vld [vmem:[#allocation8 + $0x40] sm:$0xff]
        %v343 = vld [vmem:[#allocation8 + $0x48] sm:$0xff]
        %v344 = vld [vmem:[#allocation8 + $0x50] sm:$0xff]
        %v345 = vld [vmem:[#allocation8 + $0x58] sm:$0xff]
        %v346 = vld [vmem:[#allocation8 + $0x60] sm:$0xff]
        %v347 = vld [vmem:[#allocation8 + $0x68] sm:$0xff]
        %v348 = vld [vmem:[#allocation8 + $0x70] sm:$0xff]
        %v349 = vld [vmem:[#allocation8 + $0x78] sm:$0xff]
        %v350 = vld [vmem:[#allocation8 + $0x80] sm:$0xff]
        %v351 = vld [vmem:[#allocation8 + $0x88] sm:$0xff]
        %v352 = vld [vmem:[#allocation8 + $0x90] sm:$0xff]
        %v353 = vld [vmem:[#allocation8 + $0x98] sm:$0xff]
        %v354 = vld [vmem:[#allocation8 + $0xa0] sm:$0xff]
        %v355 = vld [vmem:[#allocation8 + $0xa8] sm:$0xff]
        %v356 = vld [vmem:[#allocation8 + $0xb0] sm:$0xff]
        %v357 = vld [vmem:[#allocation8 + $0xb8] sm:$0xff]
        %v358 = vld [vmem:[#allocation8 + $0xc0] sm:$0xff]
        %v359 = vld [vmem:[#allocation8 + $0xc8] sm:$0xff]
        %v360 = vld [vmem:[#allocation8 + $0xd0] sm:$0xff]
        %v361 = vld [vmem:[#allocation8 + $0xd8] sm:$0xff]
        %v362 = vld [vmem:[#allocation8 + $0xe0] sm:$0xff]
        %v363 = vld [vmem:[#allocation8 + $0xe8] sm:$0xff]
        %v364 = vld [vmem:[#allocation8 + $0xf0] sm:$0xff]
        %v365 = vld [vmem:[#allocation8 + $0xf8] sm:$0xff]
        %v366 = vld [vmem:[#allocation8 + $0x100] sm:$0xff]
        %v367 = vld [vmem:[#allocation8 + $0x108] sm:$0xff]
        %v368 = vld [vmem:[#allocation8 + $0x110] sm:$0xff]
        %v369 = vld [vmem:[#allocation8 + $0x118] sm:$0xff]
        %v370 = vld [vmem:[#allocation8 + $0x120] sm:$0xff]
        %v371 = vld [vmem:[#allocation8 + $0x128] sm:$0xff]
        %v372 = vld [vmem:[#allocation8 + $0x130] sm:$0xff]
        %v373 = vld [vmem:[#allocation8 + $0x138] sm:$0xff]
        %v374 = vld [vmem:[#allocation8 + $0x140] sm:$0xff]
        %v375 = vld [vmem:[#allocation8 + $0x148] sm:$0xff]
        %v376 = vld [vmem:[#allocation8 + $0x150] sm:$0xff]
        %v377 = vld [vmem:[#allocation8 + $0x158] sm:$0xff]
        %v378 = vld [vmem:[#allocation8 + $0x160] sm:$0xff]
        %v379 = vld [vmem:[#allocation8 + $0x168] sm:$0xff]
        %v380 = vld [vmem:[#allocation8 + $0x170] sm:$0xff]
        %v381 = vld [vmem:[#allocation8 + $0x178] sm:$0xff]
        %v382 = vld [vmem:[#allocation8 + $0x180] sm:$0xff]
        %v383 = vld [vmem:[#allocation8 + $0x188] sm:$0xff]
        %v384 = vld [vmem:[#allocation8 + $0x190] sm:$0xff]
        %v385 = vld [vmem:[#allocation8 + $0x198] sm:$0xff]
        %v386 = vld [vmem:[#allocation8 + $0x1a0] sm:$0xff]
        %v387 = vld [vmem:[#allocation8 + $0x1a8] sm:$0xff]
        %v388 = vld [vmem:[#allocation8 + $0x1b0] sm:$0xff]
        %v389 = vld [vmem:[#allocation8 + $0x1b8] sm:$0xff]
        %v390 = vld [vmem:[#allocation8 + $0x1c0] sm:$0xff]
        %v391 = vld [vmem:[#allocation8 + $0x1c8] sm:$0xff]
        %v392 = vld [vmem:[#allocation8 + $0x1d0] sm:$0xff]
        %v393 = vld [vmem:[#allocation8 + $0x1d8] sm:$0xff]
        %v394 = vld [vmem:[#allocation8 + $0x1e0] sm:$0xff]
        %v395 = vld [vmem:[#allocation8 + $0x1e8] sm:$0xff]
        %v396 = vld [vmem:[#allocation8 + $0x1f0] sm:$0xff]
        %v397 = vld [vmem:[#allocation8 + $0x1f8] sm:$0xff]
        %v398 = vld [vmem:[#allocation8 + $0x200] sm:$0xff]
        %v399 = vld [vmem:[#allocation8 + $0x208] sm:$0xff]
        %v400 = vld [vmem:[#allocation8 + $0x210] sm:$0xff]
        %v401 = vld [vmem:[#allocation8 + $0x218] sm:$0xff]
        %v402 = vld [vmem:[#allocation8 + $0x220] sm:$0xff]
        %v403 = vld [vmem:[#allocation8 + $0x228] sm:$0xff]
        %v404 = vld [vmem:[#allocation8 + $0x230] sm:$0xff]
        %v405 = vld [vmem:[#allocation8 + $0x238] sm:$0xff]
        %v406 = vld [vmem:[#allocation8 + $0x240] sm:$0xff]
        %v407 = vld [vmem:[#allocation8 + $0x248] sm:$0xff]
        %v408 = vld [vmem:[#allocation8 + $0x250] sm:$0xff]
        %v409 = vld [vmem:[#allocation8 + $0x258] sm:$0xff]
        %v410 = vld [vmem:[#allocation8 + $0x260] sm:$0xff]
        %v411 = vld [vmem:[#allocation8 + $0x268] sm:$0xff]
        %v412 = vld [vmem:[#allocation8 + $0x270] sm:$0xff]
        %v413 = vld [vmem:[#allocation8 + $0x278] sm:$0xff]
        %v414 = vld [vmem:[#allocation8 + $0x280] sm:$0xff]
        %v415 = vld [vmem:[#allocation8 + $0x288] sm:$0xff]
        %v416 = vld [vmem:[#allocation8 + $0x290] sm:$0xff]
        %v417 = vld [vmem:[#allocation8 + $0x298] sm:$0xff]
        %v418 = vld [vmem:[#allocation8 + $0x2a0] sm:$0xff]
        %v419 = vld [vmem:[#allocation8 + $0x2a8] sm:$0xff]
        %v420 = vld [vmem:[#allocation8 + $0x2b0] sm:$0xff]
        %v421 = vld [vmem:[#allocation8 + $0x2b8] sm:$0xff]
        %v422 = vld [vmem:[#allocation8 + $0x2c0] sm:$0xff]
        %v423 = vld [vmem:[#allocation8 + $0x2c8] sm:$0xff]
        %v424 = vld [vmem:[#allocation8 + $0x2d0] sm:$0xff]
        %v425 = vld [vmem:[#allocation8 + $0x2d8] sm:$0xff]
        %v426 = vld [vmem:[#allocation8 + $0x2e0] sm:$0xff]
        %v427 = vld [vmem:[#allocation8 + $0x2e8] sm:$0xff]
        %v428 = vld [vmem:[#allocation8 + $0x2f0] sm:$0xff]
        %v429 = vld [vmem:[#allocation8 + $0x2f8] sm:$0xff]
        %v430 = vld [vmem:[#allocation8 + $0x300] sm:$0xff]
        %v431 = vld [vmem:[#allocation8 + $0x308] sm:$0xff]
        %v432 = vld [vmem:[#allocation8 + $0x310] sm:$0xff]
        %v433 = vld [vmem:[#allocation8 + $0x318] sm:$0xff]
        %v434 = vld [vmem:[#allocation8 + $0x320] sm:$0xff]
        %v435 = vld [vmem:[#allocation8 + $0x328] sm:$0xff]
        %v436 = vld [vmem:[#allocation8 + $0x330] sm:$0xff]
        %v437 = vld [vmem:[#allocation8 + $0x338] sm:$0xff]
        %v438 = vld [vmem:[#allocation8 + $0x340] sm:$0xff]
        %v443 = vcombine.high %v329, %v329
        %v444 = vcombine.high %v330, %v330
        %v445 = vcombine.high %v331, %v331
        %vm449 = vcmask 588800
        %v450 = vsel %vm449, %v332, 0
        %452 = vmatprep.subr.mxu0 0.0
        %453 = vmatpush1.msra.mxu0 %v334
        %454 = vmatprep.subr.mxu0 0.0
        %455 = vmatpush1.msra.mxu0 %v335
        %456 = vmatprep.subr.mxu0 0.0
        %457 = vmatpush1.msra.mxu0 %v336
        %458 = vmatprep.subr.mxu0 0.0
        %459 = vmatpush1.msra.mxu0 %v337
        %460 = vmatprep.subr.mxu0 0.0
        %461 = vmatpush1.msra.mxu0 %v338
        %462 = vmatprep.subr.mxu0 0.0
        %463 = vmatpush1.msra.mxu0 %v339
        %464 = vmatprep.subr.mxu0 0.0
        %465 = vmatpush1.msra.mxu0 %v340
        %466 = vmatprep.subr.mxu0 0.0
        %467 = vmatpush1.msra.mxu0 %v341
        %468 = vmatprep.subr.mxu0 0.0
        %469 = vmatpush1.msra.mxu0 %v342
        %470 = vmatprep.subr.mxu0 0.0
        %471 = vmatpush1.msra.mxu0 %v343
        %472 = vmatprep.subr.mxu0 0.0
        %473 = vmatpush1.msra.mxu0 %v344
        %474 = vmatprep.subr.mxu0 0.0
        %475 = vmatpush1.msra.mxu0 %v345
        %476 = vmatprep.subr.mxu0 0.0
        %477 = vmatpush1.msra.mxu0 %v346
        %478 = vmatprep.subr.mxu0 0.0
        %479 = vmatpush1.msra.mxu0 %v347
        %480 = vmatprep.subr.mxu0 0.0
        %481 = vmatpush1.msra.mxu0 %v348
        %482 = vmatprep.subr.mxu0 0.0
        %483 = vmatpush1.msra.mxu0 %v349
        %484 = vmatprep.subr.mxu0 0.0
        %485 = vmatpush1.msra.mxu0 %v350
        %486 = vmatprep.subr.mxu0 0.0
        %487 = vmatpush1.msra.mxu0 %v351
        %488 = vmatprep.subr.mxu0 0.0
        %489 = vmatpush1.msra.mxu0 %v352
        %490 = vmatprep.subr.mxu0 0.0
        %491 = vmatpush1.msra.mxu0 %v353
        %492 = vmatprep.subr.mxu0 0.0
        %493 = vmatpush1.msra.mxu0 %v354
        %494 = vmatprep.subr.mxu0 0.0
        %495 = vmatpush1.msra.mxu0 %v355
        %496 = vmatprep.subr.mxu0 0.0
        %497 = vmatpush1.msra.mxu0 %v356
        %498 = vmatprep.subr.mxu0 0.0
        %499 = vmatpush1.msra.mxu0 %v357
        %500 = vmatprep.subr.mxu0 0.0
        %501 = vmatpush1.msra.mxu0 %v358
        %502 = vmatprep.subr.mxu0 0.0
        %503 = vmatpush1.msra.mxu0 %v359
        %504 = vmatprep.subr.mxu0 0.0
        %505 = vmatpush1.msra.mxu0 %v360
        %506 = vmatprep.subr.mxu0 0.0
        %507 = vmatpush1.msra.mxu0 %v361
        %508 = vmatprep.subr.mxu0 0.0
        %509 = vmatpush1.msra.mxu0 %v362
        %510 = vmatprep.subr.mxu0 0.0
        %511 = vmatpush1.msra.mxu0 %v363
        %512 = vmatprep.subr.mxu0 0.0
        %513 = vmatpush1.msra.mxu0 %v364
        %514 = vmatprep.subr.mxu0 0.0
        %515 = vmatpush1.msra.mxu0 %v365
        %516 = vmatprep.mubr.f32.mxu0 %v443
        %517 = vmatmul.mubr.f32.gmra.mrb[0].mxu0 %v329
        %v518 = vpop.f32.mrb[0].mxu0
        %v519 = vadd.f32 0.0, %v518
        %v520 = vpop.f32.mrb[0].mxu0
        %521 = vdwg.mxu0
        %522 = vmatprep.subr.mxu0 0.0
        %523 = vmatpush1.msra.mxu0 %v366
        %524 = vmatprep.subr.mxu0 0.0
        %525 = vmatpush1.msra.mxu0 %v367
        %526 = vmatprep.subr.mxu0 0.0
        %527 = vmatpush1.msra.mxu0 %v368
        %528 = vmatprep.subr.mxu0 0.0
        %529 = vmatpush1.msra.mxu0 %v369
        %530 = vmatprep.subr.mxu0 0.0
        %531 = vmatpush1.msra.mxu0 %v370
        %532 = vmatprep.subr.mxu0 0.0
        %533 = vmatpush1.msra.mxu0 %v371
        %534 = vmatprep.subr.mxu0 0.0
        %535 = vmatpush1.msra.mxu0 %v372
        %536 = vmatprep.subr.mxu0 0.0
        %537 = vmatpush1.msra.mxu0 %v373
        %538 = vmatprep.subr.mxu0 0.0
        %539 = vmatpush1.msra.mxu0 %v374
        %540 = vmatprep.subr.mxu0 0.0
        %541 = vmatpush1.msra.mxu0 %v375
        %542 = vmatprep.subr.mxu0 0.0
        %543 = vmatpush1.msra.mxu0 %v376
        %544 = vmatprep.subr.mxu0 0.0
        %545 = vmatpush1.msra.mxu0 %v377
        %546 = vmatprep.subr.mxu0 0.0
        %547 = vmatpush1.msra.mxu0 %v378
        %548 = vmatprep.subr.mxu0 0.0
        %549 = vmatpush1.msra.mxu0 %v379
        %550 = vmatprep.subr.mxu0 0.0
        %551 = vmatpush1.msra.mxu0 %v380
        %552 = vmatprep.subr.mxu0 0.0
        %553 = vmatpush1.msra.mxu0 %v381
        %554 = vmatprep.subr.mxu0 0.0
        %555 = vmatpush1.msra.mxu0 %v382
        %556 = vmatprep.subr.mxu0 0.0
        %557 = vmatpush1.msra.mxu0 %v383
        %558 = vmatprep.subr.mxu0 0.0
        %559 = vmatpush1.msra.mxu0 %v384
        %560 = vmatprep.subr.mxu0 0.0
        %561 = vmatpush1.msra.mxu0 %v385
        %562 = vmatprep.subr.mxu0 0.0
        %563 = vmatpush1.msra.mxu0 %v386
        %564 = vmatprep.subr.mxu0 0.0
        %565 = vmatpush1.msra.mxu0 %v387
        %566 = vmatprep.subr.mxu0 0.0
        %567 = vmatpush1.msra.mxu0 %v388
        %568 = vmatprep.subr.mxu0 0.0
        %569 = vmatpush1.msra.mxu0 %v389
        %570 = vmatprep.subr.mxu0 0.0
        %571 = vmatpush1.msra.mxu0 %v390
        %572 = vmatprep.subr.mxu0 0.0
        %573 = vmatpush1.msra.mxu0 %v391
        %574 = vmatprep.subr.mxu0 0.0
        %575 = vmatpush1.msra.mxu0 %v392
        %576 = vmatprep.subr.mxu0 0.0
        %577 = vmatpush1.msra.mxu0 %v393
        %578 = vmatprep.subr.mxu0 0.0
        %579 = vmatpush1.msra.mxu0 %v394
        %580 = vmatprep.subr.mxu0 0.0
        %581 = vmatpush1.msra.mxu0 %v395
        %582 = vmatprep.subr.mxu0 0.0
        %583 = vmatpush1.msra.mxu0 %v396
        %584 = vmatprep.subr.mxu0 0.0
        %585 = vmatpush1.msra.mxu0 %v397
        %586 = vmatprep.mubr.f32.mxu0 %v444
        %587 = vmatmul.mubr.f32.gmra.mrb[0].mxu0 %v330
        %v588 = vpop.f32.mrb[0].mxu0
        %v589 = vadd.f32 %v519, %v588
        %v590 = vpop.f32.mrb[0].mxu0
        %591 = vdwg.mxu0
        %592 = vmatprep.subr.mxu0 0.0
        %593 = vmatpush1.msra.mxu0 %v398
        %594 = vmatprep.subr.mxu0 0.0
        %595 = vmatpush1.msra.mxu0 %v399
        %596 = vmatprep.subr.mxu0 0.0
        %597 = vmatpush1.msra.mxu0 %v400
        %598 = vmatprep.subr.mxu0 0.0
        %599 = vmatpush1.msra.mxu0 %v401
        %600 = vmatprep.subr.mxu0 0.0
        %601 = vmatpush1.msra.mxu0 %v402
        %602 = vmatprep.subr.mxu0 0.0
        %603 = vmatpush1.msra.mxu0 %v403
        %604 = vmatprep.subr.mxu0 0.0
        %605 = vmatpush1.msra.mxu0 %v404
        %606 = vmatprep.subr.mxu0 0.0
        %607 = vmatpush1.msra.mxu0 %v405
        %608 = vmatprep.subr.mxu0 0.0
        %609 = vmatpush1.msra.mxu0 %v406
        %610 = vmatprep.subr.mxu0 0.0
        %611 = vmatpush1.msra.mxu0 %v407
        %612 = vmatprep.subr.mxu0 0.0
        %613 = vmatpush1.msra.mxu0 %v408
        %614 = vmatprep.subr.mxu0 0.0
        %615 = vmatpush1.msra.mxu0 %v409
        %616 = vmatprep.subr.mxu0 0.0
        %617 = vmatpush1.msra.mxu0 %v410
        %618 = vmatprep.subr.mxu0 0.0
        %619 = vmatpush1.msra.mxu0 %v411
        %620 = vmatprep.subr.mxu0 0.0
        %621 = vmatpush1.msra.mxu0 %v412
        %622 = vmatprep.subr.mxu0 0.0
        %623 = vmatpush1.msra.mxu0 %v413
        %624 = vmatprep.subr.mxu0 0.0
        %625 = vmatpush1.msra.mxu0 %v414
        %626 = vmatprep.subr.mxu0 0.0
        %627 = vmatpush1.msra.mxu0 %v415
        %628 = vmatprep.subr.mxu0 0.0
        %629 = vmatpush1.msra.mxu0 %v416
        %630 = vmatprep.subr.mxu0 0.0
        %631 = vmatpush1.msra.mxu0 %v417
        %632 = vmatprep.subr.mxu0 0.0
        %633 = vmatpush1.msra.mxu0 %v418
        %634 = vmatprep.subr.mxu0 0.0
        %635 = vmatpush1.msra.mxu0 %v419
        %636 = vmatprep.subr.mxu0 0.0
        %637 = vmatpush1.msra.mxu0 %v420
        %638 = vmatprep.subr.mxu0 0.0
        %639 = vmatpush1.msra.mxu0 %v421
        %640 = vmatprep.subr.mxu0 0.0
        %641 = vmatpush1.msra.mxu0 %v422
        %642 = vmatprep.subr.mxu0 0.0
        %643 = vmatpush1.msra.mxu0 %v423
        %644 = vmatprep.subr.mxu0 0.0
        %645 = vmatpush1.msra.mxu0 %v424
        %646 = vmatprep.subr.mxu0 0.0
        %647 = vmatpush1.msra.mxu0 %v425
        %648 = vmatprep.subr.mxu0 0.0
        %649 = vmatpush1.msra.mxu0 %v426
        %650 = vmatprep.subr.mxu0 0.0
        %651 = vmatpush1.msra.mxu0 %v427
        %652 = vmatprep.subr.mxu0 0.0
        %653 = vmatpush1.msra.mxu0 %v428
        %654 = vmatprep.subr.mxu0 0.0
        %655 = vmatpush1.msra.mxu0 %v429
        %656 = vmatprep.mubr.f32.mxu0 %v445
        %657 = vmatmul.mubr.f32.gmra.mrb[0].mxu0 %v331
        %v658 = vpop.f32.mrb[0].mxu0
        %v659 = vadd.f32 %v589, %v658
        %v660 = vpop.f32.mrb[0].mxu0
        %661 = vdwg.mxu0
        %662 = vmatprep.subr.mxu0 0.0
        %663 = vmatpush1.msra.mxu0 %v430
        %664 = vmatprep.subr.mxu0 0.0
        %665 = vmatpush1.msra.mxu0 %v431
        %666 = vmatprep.subr.mxu0 0.0
        %667 = vmatpush1.msra.mxu0 %v432
        %668 = vmatprep.subr.mxu0 0.0
        %669 = vmatpush1.msra.mxu0 %v433
        %670 = vmatprep.subr.mxu0 0.0
        %671 = vmatpush1.msra.mxu0 %v434
        %672 = vmatprep.subr.mxu0 0.0
        %673 = vmatpush1.msra.mxu0 %v435
        %674 = vmatprep.subr.mxu0 0.0
        %675 = vmatpush1.msra.mxu0 %v436
        %676 = vmatprep.subr.mxu0 0.0
        %677 = vmatpush1.msra.mxu0 %v437
        %678 = vmatprep.subr.mxu0 0.0
        %679 = vmatpush1.msra.mxu0 %v438
        %680 = vmatprep.subr.mxu0 0.0
        %681 = vmatpush1.msra.mxu0 0.0
        %682 = vmatprep.subr.mxu0 0.0
        %683 = vmatpush1.msra.mxu0 0.0
        %684 = vmatprep.subr.mxu0 0.0
        %685 = vmatpush1.msra.mxu0 0.0
        %686 = vmatprep.subr.mxu0 0.0
        %687 = vmatpush1.msra.mxu0 0.0
        %688 = vmatprep.subr.mxu0 0.0
        %689 = vmatpush1.msra.mxu0 0.0
        %690 = vmatprep.subr.mxu0 0.0
        %691 = vmatpush1.msra.mxu0 0.0
        %692 = vmatprep.subr.mxu0 0.0
        %693 = vmatpush1.msra.mxu0 0.0
        %694 = vmatprep.subr.mxu0 0.0
        %695 = vmatpush1.msra.mxu0 0.0
        %696 = vmatprep.subr.mxu0 0.0
        %697 = vmatpush1.msra.mxu0 0.0
        %698 = vmatprep.subr.mxu0 0.0
        %699 = vmatpush1.msra.mxu0 0.0
        %700 = vmatprep.subr.mxu0 0.0
        %701 = vmatpush1.msra.mxu0 0.0
        %702 = vmatprep.subr.mxu0 0.0
        %703 = vmatpush1.msra.mxu0 0.0
        %704 = vmatprep.subr.mxu0 0.0
        %705 = vmatpush1.msra.mxu0 0.0
        %706 = vmatprep.subr.mxu0 0.0
        %707 = vmatpush1.msra.mxu0 0.0
        %708 = vmatprep.subr.mxu0 0.0
        %709 = vmatpush1.msra.mxu0 0.0
        %710 = vmatprep.subr.mxu0 0.0
        %711 = vmatpush1.msra.mxu0 0.0
        %712 = vmatprep.subr.mxu0 0.0
        %713 = vmatpush1.msra.mxu0 0.0
        %714 = vmatprep.subr.mxu0 0.0
        %715 = vmatpush1.msra.mxu0 0.0
        %716 = vmatprep.subr.mxu0 0.0
        %717 = vmatpush1.msra.mxu0 0.0
        %718 = vmatprep.subr.mxu0 0.0
        %719 = vmatpush1.msra.mxu0 0.0
        %720 = vmatprep.subr.mxu0 0.0
        %721 = vmatpush1.msra.mxu0 0.0
        %722 = vmatprep.subr.mxu0 0.0
        %723 = vmatpush1.msra.mxu0 0.0
        %724 = vmatprep.subr.mxu0 0.0
        %725 = vmatpush1.msra.mxu0 0.0
        %726 = vmatprep.mubr.f32.mxu0 0.0
        %727 = vmatmul.mubr.f32.gmra.mrb[0].mxu0 %v450
        %v728 = vpop.f32.mrb[0].mxu0
        %v729 = vadd.f32 %v659, %v728
        %v730 = vpop.f32.mrb[0].mxu0
        %731 = vdwg.mxu0
        %v732 = vadd.f32 %v333, %v729
        %733 = vst [vmem:[#allocation2] sm:$0xf] %v732
        // Predicated region
        $region49: #{tpu_custom_call.1} parent=31 // pred_check
          %p734 = pneg %p283
        $region50: #{tpu_custom_call.1} parent=31 // pred_check_branch
          %736 = sbr.rel (%p734) target = $region52
        $region51: #{tpu_custom_call.1} parent=31 // pred_region
          %v737 = vld [vmem:[#allocation2] sm:$0xf]
          %738 = vst [vmem:[%s279] sm:$0xf] %v737
        $region52: #{tpu_custom_call.1} parent=31 // pred_fallthru
          _
        %s739 = sand.u32 %s136, 1
        %s740 = scalar_lea.sflag [#allocation5], %s739
        %s741 = sand.u32 %s136, 1
        %s742 = smul.addr %s741, 4
        %s743 = scalar_lea.vmem [#allocation9], %s742
        // Predicated region
        $region53: #{tpu_custom_call.1} parent=31 // pred_check
          %p744 = pneg %p146
        $region54: #{tpu_custom_call.1} parent=31 // pred_check_branch
          %746 = sbr.rel (%p744) target = $region56
        $region55: #{tpu_custom_call.1} parent=31 // pred_region
          %s748 = ssub.s32 64, 64
          %749 = vsyncadd %s740, %s748
          %s750 = sadd.s32 %s29, %s28
          %s751 = smul.addr %s750, 64
          %s752 = scalar_lea.hbm %s3, %s751
          %s754 = sshll.u32 %s743, 4
          %s755 = int_to_ptr.vmem [resolvable:$true] %s754
          %757 = dma.vmem_to_hbm [thread:$0]  %s755, 64, %s752, %s740
        $region56: #{tpu_custom_call.1} parent=31 // pred_fallthru
          _
      $region32: #{tpu_custom_call.1} parent=5 // pred_fallthru
        _
      %p758 = scmp.le.s32.totalorder 2, %s18
      // Predicated region
      $region57: #{tpu_custom_call.1} parent=5 // pred_check
        %p759 = pneg %p758
      $region58: #{tpu_custom_call.1} parent=5 // pred_check_branch
        %761 = sbr.rel (%p759) target = $region60
      $region59: #{tpu_custom_call.1} parent=5 // pred_region
        %s762 = ssub.s32 %s18, 2
        // Predicated region
        $region61: #{tpu_custom_call.1} parent=59 // pred_check
          %p763 = pneg %p152
        $region62: #{tpu_custom_call.1} parent=59 // pred_check_branch
          %765 = sbr.rel (%p763) target = $region64
        $region63: #{tpu_custom_call.1} parent=59 // pred_region
          %s766 = sand.u32 %s137, 1
          %s767 = scalar_lea.sflag [#allocation5], %s766
          %s768 = sand.u32 %s137, 1
          %s769 = smul.addr %s768, 4
          %s770 = scalar_lea.vmem [#allocation9], %s769
          %771 = dma.done %s767, 64
        $region64: #{tpu_custom_call.1} parent=59 // pred_fallthru
          _
      $region60: #{tpu_custom_call.1} parent=5 // pred_fallthru
        _
    $region6: #{tpu_custom_call.1} parent=1 // loop_footer
      %s22 = sadd.s32 1, %s18
    $region7: #{tpu_custom_call.1} parent=1 // loop_footer_branch
      %17 = sbr.rel target = $region3
    $region8: #{tpu_custom_call.1} parent=1 // loop_exit
      _
    %772 = vsyncpa [#allocation4], 1
    %s773 = scalar_lea.sflag [#allocation4], 1
    %774 = vsyncpa %s773, 1
    %775 = vsyncpa [#allocation7], 1
    %s776 = scalar_lea.sflag [#allocation7], 1
    %777 = vsyncpa %s776, 1
    %778 = vsyncpa [#allocation5], 1
    %s779 = scalar_lea.sflag [#allocation5], 1
    %780 = vsyncpa %s779, 1

</llo_original>
